<compile_context>
chip_gen: v5e
topology: v5e:2x2
jax: 0.10.0
libtpu: 0.0.40
codegen_flags: <defaults>
</compile_context>

<pallas_src>
import functools

import jax
import jax.numpy as jnp
from jax.experimental import pallas as pl
from jax.experimental.pallas import tpu as pltpu

NEG_INF = -1e30   # finite "-inf" bias for padded logit lanes (no inf/NaN math)
LANE = 128        # TPU lane width
SUBLANE = 8       # f32 sublane count


def _round_up(n, m):
    return ((n + m - 1) // m) * m


def policy_kernel(x_ref, w1_ref, b1_ref, w2_ref, b2_ref, out_ref):
    # ---- hidden layer: Linear + ReLU (bf16 MXU inputs, f32 accumulate) -----
    x = x_ref[...].astype(jnp.bfloat16)                        # [TB, K] in-kernel cast
    h = jnp.dot(x, w1_ref[...],
                preferred_element_type=jnp.float32)            # [TB, H_pad]
    h = jnp.maximum(h + b1_ref[...], 0.0)                      # bias + ReLU

    # ---- policy head: Linear (lane-dense, A padded to 128) -----------------
    logits = jnp.dot(h.astype(jnp.bfloat16), w2_ref[...],
                     preferred_element_type=jnp.float32)       # [TB, A_pad]
    logits = logits + b2_ref[...]        # padded lanes carry a -1e30 bias

    # ---- numerically stable softmax over the last dim ----------------------
    m = jnp.max(logits, axis=-1, keepdims=True)
    e = jnp.exp(logits - m)              # exp(-1e30 - m) == 0 on padded lanes
    denom = jnp.sum(e, axis=-1, keepdims=True)
    out_ref[...] = e / denom             # exact divide: rows sum to 1 (float eps)


def prepare_params(w1, b1, w2, b2):
    """One-time prep (do at init, NOT per forward call).

    Pads hidden / action dims to 128 lanes and casts weights to bf16.
    Weights are stored [in, out]; K (input_dim) is deliberately left unpadded.
    """
    d_in, h_dim = w1.shape
    a_dim = w2.shape[1]
    h_pad = _round_up(h_dim, LANE)
    a_pad = _round_up(a_dim, LANE)
    bf16 = jnp.bfloat16
    w1_p = jnp.zeros((d_in, h_pad), bf16).at[:, :h_dim].set(w1.astype(bf16))
    b1_p = jnp.zeros((1, h_pad), jnp.float32).at[:, :h_dim].set(
        b1.reshape(1, h_dim).astype(jnp.float32))
    w2_p = jnp.zeros((h_pad, a_pad), bf16).at[:h_dim, :a_dim].set(w2.astype(bf16))
    b2_p = jnp.full((1, a_pad), NEG_INF, jnp.float32).at[:, :a_dim].set(
        b2.reshape(1, a_dim).astype(jnp.float32))
    return w1_p, b1_p, w2_p, b2_p


def _choose_tile(batch):
    """Single grid step for small/medium B; 512-row parallel tiles for big B."""
    if batch <= 512:
        return _round_up(max(batch, SUBLANE), SUBLANE)
    return 512


@functools.partial(jax.jit, static_argnames=("out_dim",))
def policy_forward(x, w1_p, b1_p, w2_p, b2_p, *, out_dim):
    """x: [B, D_in] f32 -> probs: [B, out_dim] f32.  Params from prepare_params()."""
    B, d_in = x.shape
    h_pad = w1_p.shape[1]
    a_pad = w2_p.shape[1]

    tile_b = _choose_tile(B)             # shape-based -> resolved at compile time
    b_pad = _round_up(B, tile_b)

    x_in = x
    if b_pad != B:                       # pad the batch only when strictly needed
        x_in = jnp.zeros((b_pad, d_in), x.dtype).at[:B].set(x)

    grid = (b_pad // tile_b,)

    cost = pl.CostEstimate(
        flops=2 * b_pad * (d_in * h_pad + h_pad * a_pad),
        transcendentals=b_pad * a_pad,
        bytes_accessed=(x_in.size * 4 + w1_p.size * 2 + w2_p.size * 2
                        + b1_p.size * 4 + b2_p.size * 4 + b_pad * a_pad * 4),
    )

    probs_pad = pl.pallas_call(
        policy_kernel,
        out_shape=jax.ShapeDtypeStruct((b_pad, a_pad), jnp.float32),
        grid=grid,
        in_specs=[
            pl.BlockSpec((tile_b, d_in), lambda i: (i, 0)),    # x: batch-tiled, K unpadded
            pl.BlockSpec((d_in, h_pad), lambda i: (0, 0)),     # weights stay resident
            pl.BlockSpec((1, h_pad), lambda i: (0, 0)),        # in VMEM across tiles
            pl.BlockSpec((h_pad, a_pad), lambda i: (0, 0)),
            pl.BlockSpec((1, a_pad), lambda i: (0, 0)),
        ],
        out_specs=pl.BlockSpec((tile_b, a_pad), lambda i: (i, 0)),
        compiler_params=pltpu.CompilerParams(
            # Independent batch tiles; shards across the 2 TensorCores on v7x
            # when grid > 1, harmless when grid == (1,) on v5e/v6e.
            dimension_semantics=("parallel",),
            # All blocks are KB-scale even at tile_b=512, far under every
            # chip's default scoped-VMEM limit -> no vmem_limit_bytes needed.
        ),
        cost_estimate=cost,
    )(x_in, w1_p, b1_p, w2_p, b2_p)

    return probs_pad[:B, :out_dim]


def init_params(key, input_dim, hidden_dim, output_dim):
    """nn.Linear-style uniform init (f32 master weights, [in, out] layout)."""
    k1, k2, k3, k4 = jax.random.split(key, 4)
    bound1 = 1.0 / jnp.sqrt(jnp.float32(input_dim))
    bound2 = 1.0 / jnp.sqrt(jnp.float32(hidden_dim))
    w1 = jax.random.uniform(k1, (input_dim, hidden_dim), minval=-bound1,
                            maxval=bound1, dtype=jnp.float32)
    b1 = jax.random.uniform(k2, (hidden_dim,), minval=-bound1, maxval=bound1,
                            dtype=jnp.float32)
    w2 = jax.random.uniform(k3, (hidden_dim, output_dim), minval=-bound2,
                            maxval=bound2, dtype=jnp.float32)
    b2 = jax.random.uniform(k4, (output_dim,), minval=-bound2, maxval=bound2,
                            dtype=jnp.float32)
    return w1, b1, w2, b2


if __name__ == "__main__":
    # PolicyNetwork(input_dim=16, output_dim=8, hidden_dim=[128]); batch=64.
    batch, input_dim, hidden_dim, output_dim = 64, 16, 128, 8

    key = jax.random.PRNGKey(0)
    kx, kp = jax.random.split(key)
    x = jax.random.normal(kx, (batch, input_dim), dtype=jnp.float32)
    w1, b1, w2, b2 = init_params(kp, input_dim, hidden_dim, output_dim)

    # One-time padding / bf16 cast of the weights (hoisted out of the forward).
    params = prepare_params(w1, b1, w2, b2)

    probs = policy_forward(x, *params, out_dim=output_dim)
    probs = jax.block_until_ready(probs)

    # Pure-JAX reference with identical bf16-weight / f32-accumulate math.
    h_ref = jnp.maximum(
        jnp.dot(x.astype(jnp.bfloat16), w1.astype(jnp.bfloat16),
                preferred_element_type=jnp.float32) + b1, 0.0)
    logits_ref = jnp.dot(h_ref.astype(jnp.bfloat16), w2.astype(jnp.bfloat16),
                         preferred_element_type=jnp.float32) + b2
    ref = jax.nn.softmax(logits_ref, axis=-1)

    assert probs.shape == (batch, output_dim)
    assert jnp.allclose(probs, ref, atol=2e-3, rtol=2e-3)
    assert jnp.allclose(jnp.sum(probs, axis=-1), 1.0, atol=1e-4)

    print("KERNEL_OK")
</pallas_src>

<mosaic_0001>
module attributes {stable_mosaic.version = 11 : i64} {
  func.func @policy_kernel(%arg0: i32, %arg1: memref<64x16xf32, #tpu.memory_space<vmem>>, %arg2: memref<16x128xbf16, #tpu.memory_space<vmem>>, %arg3: memref<1x128xf32, #tpu.memory_space<vmem>>, %arg4: memref<128x128xbf16, #tpu.memory_space<vmem>>, %arg5: memref<1x128xf32, #tpu.memory_space<vmem>>, %arg6: memref<64x128xf32, #tpu.memory_space<vmem>>) attributes {dimension_semantics = [#tpu.dimension_semantics<parallel>], iteration_bounds = array<i64: 1>, scalar_prefetch = 0 : i64, scratch_operands = 0 : i64, tpu.core_type = #tpu.core_type<tc>, window_params = [{transform_indices = @transform_0, window_bounds = array<i64: 64, 16>}, {pipeline_mode = #tpu.pipeline_mode<synchronous>, transform_indices = @transform_1, window_bounds = array<i64: 16, 128>}, {pipeline_mode = #tpu.pipeline_mode<synchronous>, transform_indices = @transform_2, window_bounds = array<i64: 1, 128>}, {pipeline_mode = #tpu.pipeline_mode<synchronous>, transform_indices = @transform_3, window_bounds = array<i64: 128, 128>}, {pipeline_mode = #tpu.pipeline_mode<synchronous>, transform_indices = @transform_4, window_bounds = array<i64: 1, 128>}, {transform_indices = @transform_5, window_bounds = array<i64: 64, 128>}]} {
    %c0 = arith.constant 0 : index
    %c0_0 = arith.constant 0 : index
    %0 = vector.load %arg1[%c0, %c0_0] : memref<64x16xf32, #tpu.memory_space<vmem>>, vector<64x16xf32>
    %1 = arith.truncf %0 : vector<64x16xf32> to vector<64x16xbf16>
    %c0_1 = arith.constant 0 : index
    %c0_2 = arith.constant 0 : index
    %2 = vector.load %arg2[%c0_1, %c0_2] : memref<16x128xbf16, #tpu.memory_space<vmem>>, vector<16x128xbf16>
    %cst = arith.constant dense<0.000000e+00> : vector<64x128xf32>
    %3 = tpu.matmul %1, %2, %cst {dimension_numbers = #tpu.dot_dimension_numbers<[1], [0], [0], [1], [0, 0, 1, 1], [], []>} : vector<64x16xbf16>, vector<16x128xbf16>, vector<64x128xf32> -> vector<64x128xf32>
    %c0_3 = arith.constant 0 : index
    %c0_4 = arith.constant 0 : index
    %4 = vector.load %arg3[%c0_3, %c0_4] : memref<1x128xf32, #tpu.memory_space<vmem>>, vector<1x128xf32>
    %5 = vector.broadcast %4 : vector<1x128xf32> to vector<64x128xf32>
    %6 = arith.addf %3, %5 : vector<64x128xf32>
    %cst_5 = arith.constant 0.000000e+00 : f32
    %7 = vector.broadcast %cst_5 : f32 to vector<64x128xf32>
    %8 = arith.maximumf %6, %7 : vector<64x128xf32>
    %9 = arith.truncf %8 : vector<64x128xf32> to vector<64x128xbf16>
    %c0_6 = arith.constant 0 : index
    %c0_7 = arith.constant 0 : index
    %10 = vector.load %arg4[%c0_6, %c0_7] : memref<128x128xbf16, #tpu.memory_space<vmem>>, vector<128x128xbf16>
    %cst_8 = arith.constant dense<0.000000e+00> : vector<64x128xf32>
    %11 = tpu.matmul %9, %10, %cst_8 {dimension_numbers = #tpu.dot_dimension_numbers<[1], [0], [0], [1], [0, 0, 1, 1], [], []>} : vector<64x128xbf16>, vector<128x128xbf16>, vector<64x128xf32> -> vector<64x128xf32>
    %c0_9 = arith.constant 0 : index
    %c0_10 = arith.constant 0 : index
    %12 = vector.load %arg5[%c0_9, %c0_10] : memref<1x128xf32, #tpu.memory_space<vmem>>, vector<1x128xf32>
    %13 = vector.broadcast %12 : vector<1x128xf32> to vector<64x128xf32>
    %14 = arith.addf %11, %13 : vector<64x128xf32>
    %cst_11 = arith.constant dense<0xFF800000> : vector<64xf32>
    %15 = vector.multi_reduction <maximumf>, %14, %cst_11 [1] : vector<64x128xf32> to vector<64xf32>
    %16 = vector.shape_cast %15 : vector<64xf32> to vector<64x1xf32>
    %17 = vector.broadcast %16 : vector<64x1xf32> to vector<64x128xf32>
    %18 = arith.subf %14, %17 : vector<64x128xf32>
    %19 = math.exp %18 : vector<64x128xf32>
    %cst_12 = arith.constant dense<0.000000e+00> : vector<64xf32>
    %20 = vector.multi_reduction <add>, %19, %cst_12 [1] : vector<64x128xf32> to vector<64xf32>
    %21 = vector.shape_cast %20 : vector<64xf32> to vector<64x1xf32>
    %22 = vector.broadcast %21 : vector<64x1xf32> to vector<64x128xf32>
    %23 = arith.divf %19, %22 : vector<64x128xf32>
    %c0_13 = arith.constant 0 : index
    %c0_14 = arith.constant 0 : index
    %24 = vector.load %arg6[%c0_13, %c0_14] : memref<64x128xf32, #tpu.memory_space<vmem>>, vector<64x128xf32>
    tpu.vector_store %arg6[%c0_13, %c0_14], %23 {strides = array<i32>} : memref<64x128xf32, #tpu.memory_space<vmem>>, vector<64x128xf32>,
    return
  }
  func.func @transform_0(%arg0: i32) -> (i32, i32) {
    %c0_i32 = arith.constant 0 : i32
    %c0_i32_0 = arith.constant 0 : i32
    return %arg0, %c0_i32 : i32, i32
  }
  func.func @transform_1(%arg0: i32) -> (i32, i32) {
    %c0_i32 = arith.constant 0 : i32
    %c0_i32_0 = arith.constant 0 : i32
    %c0_i32_1 = arith.constant 0 : i32
    return %c0_i32, %c0_i32_0 : i32, i32
  }
  func.func @transform_2(%arg0: i32) -> (i32, i32) {
    %c0_i32 = arith.constant 0 : i32
    %c0_i32_0 = arith.constant 0 : i32
    %c0_i32_1 = arith.constant 0 : i32
    return %c0_i32, %c0_i32_0 : i32, i32
  }
  func.func @transform_3(%arg0: i32) -> (i32, i32) {
    %c0_i32 = arith.constant 0 : i32
    %c0_i32_0 = arith.constant 0 : i32
    %c0_i32_1 = arith.constant 0 : i32
    return %c0_i32, %c0_i32_0 : i32, i32
  }
  func.func @transform_4(%arg0: i32) -> (i32, i32) {
    %c0_i32 = arith.constant 0 : i32
    %c0_i32_0 = arith.constant 0 : i32
    %c0_i32_1 = arith.constant 0 : i32
    return %c0_i32, %c0_i32_0 : i32, i32
  }
  func.func @transform_5(%arg0: i32) -> (i32, i32) {
    %c0_i32 = arith.constant 0 : i32
    %c0_i32_0 = arith.constant 0 : i32
    return %arg0, %c0_i32 : i32, i32
  }
}

</mosaic_0001>

<llo_original>
// kernel: policy_forward.1
$region0: #{policy_forward.1}
  #allocation0 [shape = 'u32[]', space=smem, size = 0x4, offset = 0x4, fixed_abs, tag = 'smem constant byte address 0x4 - core index']
  #allocation1 [shape = 'u32[72,128]{1,0:T(1,128)}', space=vmem, size = 0x9000, scoped, tag = 'internal scratch']
  %s0 = inlined_call_operand.vmem [shape: f32[64,16], index: 0, kind: input, shape index: {}]
  %s1 = inlined_call_operand.vmem [shape: bf16[16,128], index: 1, kind: input, shape index: {}]
  %s2 = inlined_call_operand.vmem [shape: f32[1,128], index: 2, kind: input, shape index: {}]
  %s3 = inlined_call_operand.vmem [shape: bf16[128,128], index: 3, kind: input, shape index: {}]
  %s4 = inlined_call_operand.vmem [shape: f32[1,128], index: 4, kind: input, shape index: {}]
  %s5 = inlined_call_operand.vmem [shape: f32[64,128], index: 5, kind: output, shape index: {}]
  %s6 = sld [smem:[#allocation0]]
  $region30: #{policy_forward.1} parent=0
    _
  %s8 = ssub.s32 1, %s6
  %s9 = scalar_select 0, %s8, %s6
  // Predicated region
  $region2: #{policy_forward.1} parent=0 // pred_check
    _
  $region3: #{policy_forward.1} parent=0 // pred_check_branch
    %11 = sbr.rel (0) target = $region5
  $region4: #{policy_forward.1} parent=0 // pred_region
    _
  $region5: #{policy_forward.1} parent=0 // pred_fallthru
    _
  // Predicated region
  $region6: #{policy_forward.1} parent=0 // pred_check
    _
  $region7: #{policy_forward.1} parent=0 // pred_check_branch
    %13 = sbr.rel (0) target = $region9
  $region8: #{policy_forward.1} parent=0 // pred_region
    _
  $region9: #{policy_forward.1} parent=0 // pred_fallthru
    _
  // Predicated region
  $region10: #{policy_forward.1} parent=0 // pred_check
    _
  $region11: #{policy_forward.1} parent=0 // pred_check_branch
    %15 = sbr.rel (0) target = $region13
  $region12: #{policy_forward.1} parent=0 // pred_region
    _
  $region13: #{policy_forward.1} parent=0 // pred_fallthru
    _
  // Predicated region
  $region14: #{policy_forward.1} parent=0 // pred_check
    _
  $region15: #{policy_forward.1} parent=0 // pred_check_branch
    %17 = sbr.rel (0) target = $region17
  $region16: #{policy_forward.1} parent=0 // pred_region
    _
  $region17: #{policy_forward.1} parent=0 // pred_fallthru
    _
  // Predicated region
  $region18: #{policy_forward.1} parent=0 // pred_check
    _
  $region19: #{policy_forward.1} parent=0 // pred_check_branch
    %19 = sbr.rel (0) target = $region21
  $region20: #{policy_forward.1} parent=0 // pred_region
    _
  $region21: #{policy_forward.1} parent=0 // pred_fallthru
    _
  %v21 = vld [vmem:[%s0] sm:$0xff]
  %v22 = vld [vmem:[%s0 + $0x8] sm:$0xff]
  %v23 = vld [vmem:[%s0 + $0x10] sm:$0xff]
  %v24 = vld [vmem:[%s0 + $0x18] sm:$0xff]
  %v25 = vld [vmem:[%s0 + $0x20] sm:$0xff]
  %v26 = vld [vmem:[%s0 + $0x28] sm:$0xff]
  %v27 = vld [vmem:[%s0 + $0x30] sm:$0xff]
  %v28 = vld [vmem:[%s0 + $0x38] sm:$0xff]
  %v29 = vpack.c.bf16 %v22, %v21
  %v30 = vpack.c.bf16 %v24, %v23
  %v31 = vpack.c.bf16 %v26, %v25
  %v32 = vpack.c.bf16 %v28, %v27
  %v33 = vld [vmem:[%s1] sm:$0xf]
  %v34 = vld [vmem:[%s1 + $0x4] sm:$0xf]
  %v35 = vld [vmem:[%s2] sm:$0x1]
  %v37 = vperm.slane %v35, 0
  %v41 = vunpack.c.l.b16 %v33
  %v42 = vunpack.c.l.b16 %v34
  %v43 = vpack.c.b16 %v42, %v41
  %vm45 = vcmask 130048
  %v47 = vsel %vm45, %v29, 0
  %v50 = vsel %vm45, %v30, 0
  %v53 = vsel %vm45, %v31, 0
  %v56 = vsel %vm45, %v32, 0
  %58 = vmatpush.bf16.msra.mxu0 0
  %59 = vmatpush.bf16.msra.mxu0 0
  %60 = vmatpush.bf16.msra.mxu0 0
  %61 = vmatpush.bf16.msra.mxu0 0
  %62 = vmatpush.bf16.msra.mxu0 0
  %63 = vmatpush.bf16.msra.mxu0 0
  %64 = vmatpush.bf16.msra.mxu0 0
  %65 = vmatpush.bf16.msra.mxu0 %v43
  %66 = vmatmul.bf16.gmra.mxu0 %v47
  %v67 = vpop.f32.mrf.mxu0
  %v68 = vadd.f32 %v37, %v67
  %v69 = vpop.f32.mrf.mxu0
  %v70 = vadd.f32 %v37, %v69
  %71 = vmatmul.bf16.gmra.mxu0 %v50
  %v72 = vpop.f32.mrf.mxu0
  %v73 = vadd.f32 %v37, %v72
  %v74 = vpop.f32.mrf.mxu0
  %v75 = vadd.f32 %v37, %v74
  %76 = vmatmul.bf16.gmra.mxu0 %v53
  %v77 = vpop.f32.mrf.mxu0
  %v78 = vadd.f32 %v37, %v77
  %v79 = vpop.f32.mrf.mxu0
  %v80 = vadd.f32 %v37, %v79
  %81 = vmatmul.bf16.gmra.mxu0 %v56
  %v82 = vpop.f32.mrf.mxu0
  %v83 = vadd.f32 %v37, %v82
  %v84 = vpop.f32.mrf.mxu0
  %v85 = vadd.f32 %v37, %v84
  %86 = vdwg.mxu0
  %v87 = vmax.f32 %v68, 0.0
  %v88 = vmax.f32 %v70, 0.0
  %v89 = vmax.f32 %v73, 0.0
  %v90 = vmax.f32 %v75, 0.0
  %v91 = vmax.f32 %v78, 0.0
  %v92 = vmax.f32 %v80, 0.0
  %v93 = vmax.f32 %v83, 0.0
  %v94 = vmax.f32 %v85, 0.0
  %v95 = vpack.c.bf16 %v88, %v87
  %v96 = vpack.c.bf16 %v90, %v89
  %v97 = vpack.c.bf16 %v92, %v91
  %v98 = vpack.c.bf16 %v94, %v93
  %v99 = vld [vmem:[%s3] sm:$0xf]
  %v100 = vld [vmem:[%s3 + $0x4] sm:$0xf]
  %v101 = vld [vmem:[%s3 + $0x8] sm:$0xf]
  %v102 = vld [vmem:[%s3 + $0xc] sm:$0xf]
  %v103 = vld [vmem:[%s3 + $0x10] sm:$0xf]
  %v104 = vld [vmem:[%s3 + $0x14] sm:$0xf]
  %v105 = vld [vmem:[%s3 + $0x18] sm:$0xf]
  %v106 = vld [vmem:[%s3 + $0x1c] sm:$0xf]
  %v107 = vld [vmem:[%s3 + $0x20] sm:$0xf]
  %v108 = vld [vmem:[%s3 + $0x24] sm:$0xf]
  %v109 = vld [vmem:[%s3 + $0x28] sm:$0xf]
  %v110 = vld [vmem:[%s3 + $0x2c] sm:$0xf]
  %v111 = vld [vmem:[%s3 + $0x30] sm:$0xf]
  %v112 = vld [vmem:[%s3 + $0x34] sm:$0xf]
  %v113 = vld [vmem:[%s3 + $0x38] sm:$0xf]
  %v114 = vld [vmem:[%s3 + $0x3c] sm:$0xf]
  %v115 = vld [vmem:[%s4] sm:$0x1]
  %v117 = vperm.slane %v115, 0
  %v135 = vunpack.c.l.b16 %v99
  %v136 = vunpack.c.l.b16 %v100
  %v137 = vunpack.c.l.b16 %v101
  %v138 = vunpack.c.l.b16 %v102
  %v139 = vunpack.c.l.b16 %v103
  %v140 = vunpack.c.l.b16 %v104
  %v141 = vunpack.c.l.b16 %v105
  %v142 = vunpack.c.l.b16 %v106
  %v143 = vunpack.c.l.b16 %v107
  %v144 = vunpack.c.l.b16 %v108
  %v145 = vunpack.c.l.b16 %v109
  %v146 = vunpack.c.l.b16 %v110
  %v147 = vunpack.c.l.b16 %v111
  %v148 = vunpack.c.l.b16 %v112
  %v149 = vunpack.c.l.b16 %v113
  %v150 = vunpack.c.l.b16 %v114
  %v151 = vpack.c.b16 %v136, %v135
  %v152 = vpack.c.b16 %v138, %v137
  %v153 = vpack.c.b16 %v140, %v139
  %v154 = vpack.c.b16 %v142, %v141
  %v155 = vpack.c.b16 %v144, %v143
  %v156 = vpack.c.b16 %v146, %v145
  %v157 = vpack.c.b16 %v148, %v147
  %v158 = vpack.c.b16 %v150, %v149
  %167 = vmatpush.bf16.msra.mxu0 %v158
  %168 = vmatpush.bf16.msra.mxu0 %v157
  %169 = vmatpush.bf16.msra.mxu0 %v156
  %170 = vmatpush.bf16.msra.mxu0 %v155
  %171 = vmatpush.bf16.msra.mxu0 %v154
  %172 = vmatpush.bf16.msra.mxu0 %v153
  %173 = vmatpush.bf16.msra.mxu0 %v152
  %174 = vmatpush.bf16.msra.mxu0 %v151
  %175 = vmatmul.bf16.gmra.mxu0 %v95
  %v176 = vpop.f32.mrf.mxu0
  %v177 = vadd.f32 %v117, %v176
  %v178 = vpop.f32.mrf.mxu0
  %v179 = vadd.f32 %v117, %v178
  %180 = vmatmul.bf16.gmra.mxu0 %v96
  %v181 = vpop.f32.mrf.mxu0
  %v182 = vadd.f32 %v117, %v181
  %v183 = vpop.f32.mrf.mxu0
  %v184 = vadd.f32 %v117, %v183
  %185 = vmatmul.bf16.gmra.mxu0 %v97
  %v186 = vpop.f32.mrf.mxu0
  %v187 = vadd.f32 %v117, %v186
  %v188 = vpop.f32.mrf.mxu0
  %v189 = vadd.f32 %v117, %v188
  %190 = vmatmul.bf16.gmra.mxu0 %v98
  %v191 = vpop.f32.mrf.mxu0
  %v192 = vadd.f32 %v117, %v191
  %v193 = vpop.f32.mrf.mxu0
  %v194 = vadd.f32 %v117, %v193
  %195 = vdwg.mxu0
  %196 = vmax.xlane.f32.xlu0 %v177
  %v197 = vpop.xlane.xlu0 %196
  %198 = vmax.xlane.f32.xlu0 %v179
  %v199 = vpop.xlane.xlu0 %198
  %200 = vmax.xlane.f32.xlu0 %v182
  %v201 = vpop.xlane.xlu0 %200
  %202 = vmax.xlane.f32.xlu0 %v184
  %v203 = vpop.xlane.xlu0 %202
  %204 = vmax.xlane.f32.xlu0 %v187
  %v205 = vpop.xlane.xlu0 %204
  %206 = vmax.xlane.f32.xlu0 %v189
  %v207 = vpop.xlane.xlu0 %206
  %208 = vmax.xlane.f32.xlu0 %v192
  %v209 = vpop.xlane.xlu0 %208
  %210 = vmax.xlane.f32.xlu0 %v194
  %v211 = vpop.xlane.xlu0 %210
  %v212 = vsub.f32 %v177, %v197
  %v213 = vsub.f32 %v179, %v199
  %v214 = vsub.f32 %v182, %v201
  %v215 = vsub.f32 %v184, %v203
  %v216 = vsub.f32 %v187, %v205
  %v217 = vsub.f32 %v189, %v207
  %v218 = vsub.f32 %v192, %v209
  %v219 = vsub.f32 %v194, %v211
  %v220 = vmul.f32 %v212, 1.442695
  %v221 = vpow.pop %v220
  %v222 = vmul.f32 %v213, 1.442695
  %v223 = vpow.pop %v222
  %v224 = vmul.f32 %v214, 1.442695
  %v225 = vpow.pop %v224
  %v226 = vmul.f32 %v215, 1.442695
  %v227 = vpow.pop %v226
  %v228 = vmul.f32 %v216, 1.442695
  %v229 = vpow.pop %v228
  %v230 = vmul.f32 %v217, 1.442695
  %v231 = vpow.pop %v230
  %v232 = vmul.f32 %v218, 1.442695
  %v233 = vpow.pop %v232
  %v234 = vmul.f32 %v219, 1.442695
  %v235 = vpow.pop %v234
  %236 = vadd.xlane.f32.xlu0 %v221
  %v237 = vpop.xlane.xlu0 %236
  %238 = vadd.xlane.f32.xlu0 %v223
  %v239 = vpop.xlane.xlu0 %238
  %240 = vadd.xlane.f32.xlu0 %v225
  %v241 = vpop.xlane.xlu0 %240
  %242 = vadd.xlane.f32.xlu0 %v227
  %v243 = vpop.xlane.xlu0 %242
  %244 = vadd.xlane.f32.xlu0 %v229
  %v245 = vpop.xlane.xlu0 %244
  %246 = vadd.xlane.f32.xlu0 %v231
  %v247 = vpop.xlane.xlu0 %246
  %248 = vadd.xlane.f32.xlu0 %v233
  %v249 = vpop.xlane.xlu0 %248
  %250 = vadd.xlane.f32.xlu0 %v235
  %v251 = vpop.xlane.xlu0 %250
  %v252 = vrcp.pop %v237
  %v253 = vmul.f32 %v237, %v252
  %v254 = vsub.f32 1.0, %v253
  %v255 = vmul.f32 %v252, %v254
  %v256 = vadd.f32 %v252, %v255
  %vm257 = vweird.f32 %v237
  %vm258 = vweird.f32 %v252
  %vm259 = vmor %vm257, %vm258
  %v260 = vsel %vm259, %v252, %v256
  %v261 = vand.u32 2147483647, %v237
  %vm262 = vcmp.eq.f32.partialorder %v261, 8.507059e+37
  %v263 = vand.u32 %v237, 2147483648
  %v264 = vor.u32 1.1754944e-38, %v263
  %v265 = vsel %vm262, %v264, %v260
  %v266 = vmul.f32 %v221, %v265
  %v267 = vrcp.pop %v239
  %v268 = vmul.f32 %v239, %v267
  %v269 = vsub.f32 1.0, %v268
  %v270 = vmul.f32 %v267, %v269
  %v271 = vadd.f32 %v267, %v270
  %vm272 = vweird.f32 %v239
  %vm273 = vweird.f32 %v267
  %vm274 = vmor %vm272, %vm273
  %v275 = vsel %vm274, %v267, %v271
  %v276 = vand.u32 2147483647, %v239
  %vm277 = vcmp.eq.f32.partialorder %v276, 8.507059e+37
  %v278 = vand.u32 %v239, 2147483648
  %v279 = vor.u32 1.1754944e-38, %v278
  %v280 = vsel %vm277, %v279, %v275
  %v281 = vmul.f32 %v223, %v280
  %v282 = vrcp.pop %v241
  %v283 = vmul.f32 %v241, %v282
  %v284 = vsub.f32 1.0, %v283
  %v285 = vmul.f32 %v282, %v284
  %v286 = vadd.f32 %v282, %v285
  %vm287 = vweird.f32 %v241
  %vm288 = vweird.f32 %v282
  %vm289 = vmor %vm287, %vm288
  %v290 = vsel %vm289, %v282, %v286
  %v291 = vand.u32 2147483647, %v241
  %vm292 = vcmp.eq.f32.partialorder %v291, 8.507059e+37
  %v293 = vand.u32 %v241, 2147483648
  %v294 = vor.u32 1.1754944e-38, %v293
  %v295 = vsel %vm292, %v294, %v290
  %v296 = vmul.f32 %v225, %v295
  %v297 = vrcp.pop %v243
  %v298 = vmul.f32 %v243, %v297
  %v299 = vsub.f32 1.0, %v298
  %v300 = vmul.f32 %v297, %v299
  %v301 = vadd.f32 %v297, %v300
  %vm302 = vweird.f32 %v243
  %vm303 = vweird.f32 %v297
  %vm304 = vmor %vm302, %vm303
  %v305 = vsel %vm304, %v297, %v301
  %v306 = vand.u32 2147483647, %v243
  %vm307 = vcmp.eq.f32.partialorder %v306, 8.507059e+37
  %v308 = vand.u32 %v243, 2147483648
  %v309 = vor.u32 1.1754944e-38, %v308
  %v310 = vsel %vm307, %v309, %v305
  %v311 = vmul.f32 %v227, %v310
  %v312 = vrcp.pop %v245
  %v313 = vmul.f32 %v245, %v312
  %v314 = vsub.f32 1.0, %v313
  %v315 = vmul.f32 %v312, %v314
  %v316 = vadd.f32 %v312, %v315
  %vm317 = vweird.f32 %v245
  %vm318 = vweird.f32 %v312
  %vm319 = vmor %vm317, %vm318
  %v320 = vsel %vm319, %v312, %v316
  %v321 = vand.u32 2147483647, %v245
  %vm322 = vcmp.eq.f32.partialorder %v321, 8.507059e+37
  %v323 = vand.u32 %v245, 2147483648
  %v324 = vor.u32 1.1754944e-38, %v323
  %v325 = vsel %vm322, %v324, %v320
  %v326 = vmul.f32 %v229, %v325
  %v327 = vrcp.pop %v247
  %v328 = vmul.f32 %v247, %v327
  %v329 = vsub.f32 1.0, %v328
  %v330 = vmul.f32 %v327, %v329
  %v331 = vadd.f32 %v327, %v330
  %vm332 = vweird.f32 %v247
  %vm333 = vweird.f32 %v327
  %vm334 = vmor %vm332, %vm333
  %v335 = vsel %vm334, %v327, %v331
  %v336 = vand.u32 2147483647, %v247
  %vm337 = vcmp.eq.f32.partialorder %v336, 8.507059e+37
  %v338 = vand.u32 %v247, 2147483648
  %v339 = vor.u32 1.1754944e-38, %v338
  %v340 = vsel %vm337, %v339, %v335
  %v341 = vmul.f32 %v231, %v340
  %v342 = vrcp.pop %v249
  %v343 = vmul.f32 %v249, %v342
  %v344 = vsub.f32 1.0, %v343
  %v345 = vmul.f32 %v342, %v344
  %v346 = vadd.f32 %v342, %v345
  %vm347 = vweird.f32 %v249
  %vm348 = vweird.f32 %v342
  %vm349 = vmor %vm347, %vm348
  %v350 = vsel %vm349, %v342, %v346
  %v351 = vand.u32 2147483647, %v249
  %vm352 = vcmp.eq.f32.partialorder %v351, 8.507059e+37
  %v353 = vand.u32 %v249, 2147483648
  %v354 = vor.u32 1.1754944e-38, %v353
  %v355 = vsel %vm352, %v354, %v350
  %v356 = vmul.f32 %v233, %v355
  %v357 = vrcp.pop %v251
  %v358 = vmul.f32 %v251, %v357
  %v359 = vsub.f32 1.0, %v358
  %v360 = vmul.f32 %v357, %v359
  %v361 = vadd.f32 %v357, %v360
  %vm362 = vweird.f32 %v251
  %vm363 = vweird.f32 %v357
  %vm364 = vmor %vm362, %vm363
  %v365 = vsel %vm364, %v357, %v361
  %v366 = vand.u32 2147483647, %v251
  %vm367 = vcmp.eq.f32.partialorder %v366, 8.507059e+37
  %v368 = vand.u32 %v251, 2147483648
  %v369 = vor.u32 1.1754944e-38, %v368
  %v370 = vsel %vm367, %v369, %v365
  %v371 = vmul.f32 %v235, %v370
  %372 = vst [vmem:[%s5] sm:$0xff] %v266
  %373 = vst [vmem:[%s5 + $0x8] sm:$0xff] %v281
  %374 = vst [vmem:[%s5 + $0x10] sm:$0xff] %v296
  %375 = vst [vmem:[%s5 + $0x18] sm:$0xff] %v311
  %376 = vst [vmem:[%s5 + $0x20] sm:$0xff] %v326
  %377 = vst [vmem:[%s5 + $0x28] sm:$0xff] %v341
  %378 = vst [vmem:[%s5 + $0x30] sm:$0xff] %v356
  %379 = vst [vmem:[%s5 + $0x38] sm:$0xff] %v371
  // Predicated region
  $region22: #{policy_forward.1} parent=0 // pred_check
    _
  $region23: #{policy_forward.1} parent=0 // pred_check_branch
    %381 = sbr.rel (0) target = $region25
  $region24: #{policy_forward.1} parent=0 // pred_region
    _
  $region25: #{policy_forward.1} parent=0 // pred_fallthru
    _
  // Predicated region
  $region26: #{policy_forward.1} parent=0 // pred_check
    _
  $region27: #{policy_forward.1} parent=0 // pred_check_branch
    %383 = sbr.rel (0) target = $region29
  $region28: #{policy_forward.1} parent=0 // pred_region
    _
  $region29: #{policy_forward.1} parent=0 // pred_fallthru
    _

</llo_original>
